<compile_context>
chip_gen: v6e
topology: v6e:2x2x1
jax: 0.10.0
libtpu: 0.0.40
codegen_flags: <defaults>
</compile_context>

<pallas_src>
import jax
import jax.numpy as jnp
from jax.experimental import pallas as pl
from jax.experimental.pallas import tpu as pltpu


_SQRT_2_OVER_PI = 0.7978845608028654        # sqrt(2/pi)
_GELU_C2 = _SQRT_2_OVER_PI * 0.044715       # folded constant


def _gelu_tanh(h):
    # 0.5*h*(1 + tanh(sqrt(2/pi)*(h + 0.044715*h^3))) with constants folded:
    # inner = h*(c + c2*h^2).  tanh runs on the EUP (separate VLIW slot).
    inner = h * (_SQRT_2_OVER_PI + _GELU_C2 * (h * h))
    return 0.5 * h * (1.0 + jnp.tanh(inner))


def feedforward_kernel(x_ref, w1_ref, b1_ref, w2_ref, b2_ref, o_ref):
    # x_ref: (tm, E); w1_ref: (E, H); b1_ref: (1, H); w2_ref: (H, E); b2_ref: (1, E)
    w1 = w1_ref[...]
    w2 = w2_ref[...]
    # In-kernel cast of the activations to the matmul-operand dtype (no-op when
    # dtypes already match).  Keeps x streaming from HBM in its storage dtype.
    x = x_ref[...].astype(w1.dtype)

    # First matmul on the MXU, f32 accumulation, f32 bias add.
    h = jnp.dot(x, w1, preferred_element_type=jnp.float32) + b1_ref[...]
    # GELU + bias math in f32 (safe on v5e, which lacks bf16 VPU/EUP).
    h = _gelu_tanh(h)
    # Second matmul: operands back in the matmul dtype, f32 accumulation.
    out = jnp.dot(h.astype(w2.dtype), w2,
                  preferred_element_type=jnp.float32) + b2_ref[...]
    o_ref[...] = out.astype(o_ref.dtype)


def _round_up(v, m):
    return ((v + m - 1) // m) * m


def feedforward(x, w1, b1, w2, b2, *, tm=None, compute_dtype=None, out_dtype=None):
    """x: (tokens, E); w1: (E, H); b1: (H,); w2: (H, E); b2: (E,).

    compute_dtype: optional dtype for the matmul operands (e.g. jnp.bfloat16 on
    v6e/v7x).  Accumulation and GELU remain f32.  out_dtype defaults to x.dtype.
    """
    tokens, E = x.shape
    H = w1.shape[1]
    if out_dtype is None:
        out_dtype = x.dtype

    # Weights are tiny and reused across every grid step: cast them once in the
    # wrapper.  Activations are NOT cast here (that would be an extra un-fused
    # HBM pass over x); they are cast inside the kernel.
    if compute_dtype is not None:
        w1_in = w1.astype(compute_dtype)
        w2_in = w2.astype(compute_dtype)
    else:
        w1_in, w2_in = w1, w2

    x_bytes = jnp.dtype(x.dtype).itemsize
    w_bytes = jnp.dtype(w1_in.dtype).itemsize
    o_bytes = jnp.dtype(out_dtype).itemsize

    # ---- token-tile selection -------------------------------------------------
    # Sublane alignment: 8 rows per f32 vreg, 16 for 2-byte activation dtypes.
    align = 16 if x_bytes == 2 else 8
    # Cap tm so streamed tiles + intermediates stay within ~24 MiB of VMEM
    # (leaves room for resident weights and compiler temps even on v7x).
    per_row = 2 * E * x_bytes + 2 * E * o_bytes + 4 * H * 4
    tm_cap = max(align, ((24 * (1 << 20)) // per_row) // align * align)

    if tm is None:
        if tokens <= align:
            tm = tokens                                   # single tiny step
        else:
            # >= 2 grid steps so both v7x TensorCores get work; big tiles
            # (up to 4096 rows) amortize per-step overhead and make large,
            # efficient HBM DMAs.
            tm = min(4096, _round_up(pl.cdiv(tokens, 2), align))
    tm = max(1, min(tm, tokens, tm_cap))
    if tm < tokens:
        # (8,128) BlockSpec rule: second-to-last block dim must be 8-aligned
        # (16 keeps 2-byte activations sublane-packed) unless it spans the
        # full array.
        tm = min(_round_up(tm, align), tokens)

    # Ragged last block: out-of-bounds rows are never written back, so no
    # wrapper-side jnp.pad (and no extra HBM pass over x) is needed.
    grid = (pl.cdiv(tokens, tm),)

    b1_2d = b1.reshape(1, H).astype(jnp.float32)
    b2_2d = b2.reshape(1, E).astype(jnp.float32)

    # ---- VMEM footprint / compiler params --------------------------------------
    est_bytes = (
        (E * H + H * E) * w_bytes      # W1, W2 resident (single-buffered)
        + (H + E) * 4                  # biases
        + 2 * tm * E * x_bytes         # double-buffered x tiles
        + 2 * tm * E * o_bytes         # double-buffered out tiles
        + 3 * tm * H * 4               # h + GELU temps + operand-cast copy
    )
    compiler_kwargs = dict(dimension_semantics=("parallel",))
    if est_bytes > 16 * (1 << 20):     # v5e default scoped limit is ~16 MiB
        try:
            phys = int(pltpu.get_tpu_info().vmem_capacity_bytes)
        except Exception:
            phys = 64 * (1 << 20)      # conservative (v7x-sized) fallback
        compiler_kwargs["vmem_limit_bytes"] = int(
            min(est_bytes * 1.5, phys - 8 * (1 << 20)))

    # ---- cost estimate for the XLA scheduler ------------------------------------
    bytes_accessed = (
        tokens * E * (x_bytes + o_bytes)              # stream x in, out back
        + (E * H + H * E) * w_bytes + (H + E) * 4     # weights/biases once
    )
    cost = pl.CostEstimate(
        flops=4 * tokens * E * H,                     # two matmuls, 2*M*K*N each
        transcendentals=tokens * H,                   # one tanh per hidden elem
        bytes_accessed=int(bytes_accessed),
    )

    resident = pl.Buffered(1)   # constant-index blocks: fetch once, no 2x buffer
    out = pl.pallas_call(
        feedforward_kernel,
        out_shape=jax.ShapeDtypeStruct((tokens, E), out_dtype),
        grid_spec=pltpu.PrefetchScalarGridSpec(
            num_scalar_prefetch=0,
            grid=grid,
            in_specs=[
                pl.BlockSpec((tm, E), lambda i: (i, 0)),                         # x (streams)
                pl.BlockSpec((E, H), lambda i: (0, 0), pipeline_mode=resident),  # W1
                pl.BlockSpec((1, H), lambda i: (0, 0), pipeline_mode=resident),  # b1
                pl.BlockSpec((H, E), lambda i: (0, 0), pipeline_mode=resident),  # W2
                pl.BlockSpec((1, E), lambda i: (0, 0), pipeline_mode=resident),  # b2
            ],
            out_specs=pl.BlockSpec((tm, E), lambda i: (i, 0)),
        ),
        compiler_params=pltpu.CompilerParams(**compiler_kwargs),
        cost_estimate=cost,
    )(x, w1_in, b1_2d, w2_in, b2_2d)
    return out


def feedforward_ref(x, w1, b1, w2, b2):
    h = x @ w1 + b1
    h = _gelu_tanh(h)
    return h @ w2 + b2


if __name__ == "__main__":
    # config['emb_dim'] = 32 ; input x: (batch=2, seq=8, emb=32)
    emb_dim = 32
    hidden = 4 * emb_dim
    batch, seq = 2, 8

    key = jax.random.PRNGKey(0)
    kx, kw1, kb1, kw2, kb2 = jax.random.split(key, 5)

    x = jax.random.normal(kx, (batch, seq, emb_dim), dtype=jnp.float32)

    # nn.Linear-like init: uniform(-1/sqrt(fan_in), 1/sqrt(fan_in)); stored transposed.
    lim1 = 1.0 / jnp.sqrt(jnp.float32(emb_dim))
    lim2 = 1.0 / jnp.sqrt(jnp.float32(hidden))
    w1 = jax.random.uniform(kw1, (emb_dim, hidden), jnp.float32, -lim1, lim1)
    b1 = jax.random.uniform(kb1, (hidden,), jnp.float32, -lim1, lim1)
    w2 = jax.random.uniform(kw2, (hidden, emb_dim), jnp.float32, -lim2, lim2)
    b2 = jax.random.uniform(kb2, (emb_dim,), jnp.float32, -lim2, lim2)

    x2d = x.reshape(batch * seq, emb_dim)
    ref = feedforward_ref(x2d, w1, b1, w2, b2)

    # f32 path: 2 token tiles at this toy size (so v7x uses both TensorCores).
    out2d = feedforward(x2d, w1, b1, w2, b2)
    jax.block_until_ready(out2d)
    out = out2d.reshape(batch, seq, emb_dim)
    assert jnp.allclose(out2d, ref, atol=1e-5, rtol=1e-5), "f32 mismatch vs reference"

    # bf16 matmul-operand path (v6e/v7x fast path): f32 accumulate + f32 GELU,
    # operands cast in-kernel, so tolerance is looser but still tight.
    out2d_bf16 = feedforward(x2d, w1, b1, w2, b2, compute_dtype=jnp.bfloat16)
    jax.block_until_ready(out2d_bf16)
    assert jnp.allclose(out2d_bf16, ref, atol=3e-2, rtol=3e-2), "bf16 mismatch vs reference"

    # Ragged token count (not a multiple of the tile) exercises the masked
    # last-block writeback path that replaced the wrapper-side jnp.pad.
    xr = jax.random.normal(kx, (20, emb_dim), dtype=jnp.float32)
    out_r = feedforward(xr, w1, b1, w2, b2, tm=8)
    jax.block_until_ready(out_r)
    ref_r = feedforward_ref(xr, w1, b1, w2, b2)
    assert out_r.shape == ref_r.shape
    assert jnp.allclose(out_r, ref_r, atol=1e-5, rtol=1e-5), "ragged mismatch vs reference"

    print("KERNEL_OK")
</pallas_src>

<mosaic_0001>
module attributes {stable_mosaic.version = 11 : i64} {
  func.func @feedforward_kernel(%arg0: i32, %arg1: memref<8x32xf32, #tpu.memory_space<vmem>>, %arg2: memref<32x128xf32, #tpu.memory_space<vmem>>, %arg3: memref<1x128xf32, #tpu.memory_space<vmem>>, %arg4: memref<128x32xf32, #tpu.memory_space<vmem>>, %arg5: memref<1x32xf32, #tpu.memory_space<vmem>>, %arg6: memref<8x32xf32, #tpu.memory_space<vmem>>) attributes {dimension_semantics = [#tpu.dimension_semantics<parallel>], iteration_bounds = array<i64: 2>, scalar_prefetch = 0 : i64, scratch_operands = 0 : i64, tpu.core_type = #tpu.core_type<tc>, window_params = [{transform_indices = @transform_0, window_bounds = array<i64: 8, 32>}, {pipeline_mode = #tpu.pipeline_mode<synchronous>, transform_indices = @transform_1, window_bounds = array<i64: 32, 128>}, {pipeline_mode = #tpu.pipeline_mode<synchronous>, transform_indices = @transform_2, window_bounds = array<i64: 1, 128>}, {pipeline_mode = #tpu.pipeline_mode<synchronous>, transform_indices = @transform_3, window_bounds = array<i64: 128, 32>}, {pipeline_mode = #tpu.pipeline_mode<synchronous>, transform_indices = @transform_4, window_bounds = array<i64: 1, 32>}, {transform_indices = @transform_5, window_bounds = array<i64: 8, 32>}]} {
    %c0 = arith.constant 0 : index
    %c0_0 = arith.constant 0 : index
    %0 = vector.load %arg2[%c0, %c0_0] : memref<32x128xf32, #tpu.memory_space<vmem>>, vector<32x128xf32>
    %c0_1 = arith.constant 0 : index
    %c0_2 = arith.constant 0 : index
    %1 = vector.load %arg4[%c0_1, %c0_2] : memref<128x32xf32, #tpu.memory_space<vmem>>, vector<128x32xf32>
    %c0_3 = arith.constant 0 : index
    %c0_4 = arith.constant 0 : index
    %2 = vector.load %arg1[%c0_3, %c0_4] : memref<8x32xf32, #tpu.memory_space<vmem>>, vector<8x32xf32>
    %cst = arith.constant dense<0.000000e+00> : vector<8x128xf32>
    %3 = tpu.matmul %2, %0, %cst {dimension_numbers = #tpu.dot_dimension_numbers<[1], [0], [0], [1], [0, 0, 1, 1], [], []>} : vector<8x32xf32>, vector<32x128xf32>, vector<8x128xf32> -> vector<8x128xf32>
    %c0_5 = arith.constant 0 : index
    %c0_6 = arith.constant 0 : index
    %4 = vector.load %arg3[%c0_5, %c0_6] : memref<1x128xf32, #tpu.memory_space<vmem>>, vector<1x128xf32>
    %5 = vector.broadcast %4 : vector<1x128xf32> to vector<8x128xf32>
    %6 = arith.addf %3, %5 : vector<8x128xf32>
    %7 = arith.mulf %6, %6 : vector<8x128xf32>
    %cst_7 = arith.constant 0.0356774069 : f32
    %8 = vector.broadcast %cst_7 : f32 to vector<8x128xf32>
    %9 = arith.mulf %8, %7 : vector<8x128xf32>
    %cst_8 = arith.constant 0.797884583 : f32
    %10 = vector.broadcast %cst_8 : f32 to vector<8x128xf32>
    %11 = arith.addf %10, %9 : vector<8x128xf32>
    %12 = arith.mulf %6, %11 : vector<8x128xf32>
    %cst_9 = arith.constant 5.000000e-01 : f32
    %13 = vector.broadcast %cst_9 : f32 to vector<8x128xf32>
    %14 = arith.mulf %13, %6 : vector<8x128xf32>
    %15 = math.tanh %12 : vector<8x128xf32>
    %cst_10 = arith.constant 1.000000e+00 : f32
    %16 = vector.broadcast %cst_10 : f32 to vector<8x128xf32>
    %17 = arith.addf %16, %15 : vector<8x128xf32>
    %18 = arith.mulf %14, %17 : vector<8x128xf32>
    %cst_11 = arith.constant dense<0.000000e+00> : vector<8x32xf32>
    %19 = tpu.matmul %18, %1, %cst_11 {dimension_numbers = #tpu.dot_dimension_numbers<[1], [0], [0], [1], [0, 0, 1, 1], [], []>} : vector<8x128xf32>, vector<128x32xf32>, vector<8x32xf32> -> vector<8x32xf32>
    %c0_12 = arith.constant 0 : index
    %c0_13 = arith.constant 0 : index
    %20 = vector.load %arg5[%c0_12, %c0_13] : memref<1x32xf32, #tpu.memory_space<vmem>>, vector<1x32xf32>
    %21 = vector.broadcast %20 : vector<1x32xf32> to vector<8x32xf32>
    %22 = arith.addf %19, %21 : vector<8x32xf32>
    %c0_14 = arith.constant 0 : index
    %c0_15 = arith.constant 0 : index
    %23 = vector.load %arg6[%c0_14, %c0_15] : memref<8x32xf32, #tpu.memory_space<vmem>>, vector<8x32xf32>
    tpu.vector_store %arg6[%c0_14, %c0_15], %22 {strides = array<i32>} : memref<8x32xf32, #tpu.memory_space<vmem>>, vector<8x32xf32>,
    return
  }
  func.func @transform_0(%arg0: i32) -> (i32, i32) {
    %c0_i32 = arith.constant 0 : i32
    %c0_i32_0 = arith.constant 0 : i32
    return %arg0, %c0_i32 : i32, i32
  }
  func.func @transform_1(%arg0: i32) -> (i32, i32) {
    %c0_i32 = arith.constant 0 : i32
    %c0_i32_0 = arith.constant 0 : i32
    %c0_i32_1 = arith.constant 0 : i32
    return %c0_i32, %c0_i32_0 : i32, i32
  }
  func.func @transform_2(%arg0: i32) -> (i32, i32) {
    %c0_i32 = arith.constant 0 : i32
    %c0_i32_0 = arith.constant 0 : i32
    %c0_i32_1 = arith.constant 0 : i32
    return %c0_i32, %c0_i32_0 : i32, i32
  }
  func.func @transform_3(%arg0: i32) -> (i32, i32) {
    %c0_i32 = arith.constant 0 : i32
    %c0_i32_0 = arith.constant 0 : i32
    %c0_i32_1 = arith.constant 0 : i32
    return %c0_i32, %c0_i32_0 : i32, i32
  }
  func.func @transform_4(%arg0: i32) -> (i32, i32) {
    %c0_i32 = arith.constant 0 : i32
    %c0_i32_0 = arith.constant 0 : i32
    %c0_i32_1 = arith.constant 0 : i32
    return %c0_i32, %c0_i32_0 : i32, i32
  }
  func.func @transform_5(%arg0: i32) -> (i32, i32) {
    %c0_i32 = arith.constant 0 : i32
    %c0_i32_0 = arith.constant 0 : i32
    return %arg0, %c0_i32 : i32, i32
  }
}

</mosaic_0001>

<llo_original>
// kernel: tpu_custom_call.1
$region0: #{tpu_custom_call.1}
  #allocation0 [shape = 'u32[]', space=smem, size = 0x4, offset = 0x4, fixed_abs, tag = 'smem constant byte address 0x4 - core index']
  #allocation1 [shape = 'u32[144,128]{1,0:T(1,128)}', space=vmem, size = 0x12000, scoped, tag = 'internal scratch']
  %s0 = inlined_call_operand.vmem [shape: f32[16,32], index: 0, kind: input, shape index: {}]
  %s1 = inlined_call_operand.vmem [shape: f32[32,128], index: 1, kind: input, shape index: {}]
  %s2 = inlined_call_operand.vmem [shape: f32[1,128], index: 2, kind: input, shape index: {}]
  %s3 = inlined_call_operand.vmem [shape: f32[128,32], index: 3, kind: input, shape index: {}]
  %s4 = inlined_call_operand.vmem [shape: f32[1,32], index: 4, kind: input, shape index: {}]
  %s5 = inlined_call_operand.hbm [shape: f32[16,32], index: 5, kind: output, shape index: {}]
  %s6 = sld [smem:[#allocation0]]
  $region53: #{tpu_custom_call.1} parent=0
    _
  %s8 = ssub.s32 1, %s6
  %s9 = scalar_select 0, %s8, %s6
  $region1: #{tpu_custom_call.1} parent=0
    #allocation2 [shape = 'u8[8192]{0}', space=vmem, size = 0x2000, scoped, tag = 'output window, operand 0']
    #allocation3 [shape = 's32[2]{0}', space=sflag, size = 0x8, scoped, tag = 'scoped memory for tpu_custom_call.1']
    %10 = vsyncpa [#allocation3], 0
    %s11 = scalar_lea.sflag [#allocation3], 1
    %12 = vsyncpa %s11, 0
    loop: start=0, step=1, limit=4
    $region2: #{tpu_custom_call.1} parent=1 // loop_pre_header
      _
    $region3: #{tpu_custom_call.1} parent=1 // loop_header
      %s14 = sphi 0, %s18
      %p15 = scmp.ge.s32.totalorder %s14, 4
      %s24 = sphi 0, %s26
      %s27 = sphi 0, %s24
      %s28 = sphi 0, %s27
      %s44 = sphi 0, %s28
      %s48 = sphi 0, %s48
      %s50 = sphi 0, %s48
      %s51 = sphi 0, %s50
      %s65 = sphi 0, %s51
      %s69 = sphi 0, %s69
      %s71 = sphi 0, %s69
      %s72 = sphi 0, %s71
      %s86 = sphi 0, %s72
      %s90 = sphi 0, %s90
      %s92 = sphi 0, %s90
      %s93 = sphi 0, %s92
      %s107 = sphi 0, %s93
      %s111 = sphi 0, %s111
      %s113 = sphi 0, %s111
      %s114 = sphi 0, %s113
      %s128 = sphi 0, %s114
      %s134 = sphi 0, %s136
      %s137 = sphi 0, %s134
      %s138 = sphi 0, %s137
      %s154 = sphi 0, %s138
    $region4: #{tpu_custom_call.1} parent=1 // loop_header_branch
      %17 = sbr.rel (%p15) target = $region8
    $region5: #{tpu_custom_call.1} parent=1 // loop_body
      %s19 = ssub.s32 %s14, 1
      %s20 = ssub.s32 %s14, 2
      %s21 = sadd.s32 %s14, 1
      %s22 = ssub.s32 %s14, %s21
      %p23 = scmp.eq.s32.totalorder %s22, 0
      %s25 = sadd.s32 %s24, 1
      %s26 = scalar_select %p23, %s24, %s25
      %p29 = pneg %p23
      %p30 = scmp.eq.s32.totalorder %s14, 1
      %p31 = por %p29, %p30
      %p32 = scmp.ne.s32.totalorder %s24, %s27
      %p33 = scmp.eq.s32.totalorder %s14, 0
      %p34 = por %p32, %p33
      %p35 = scmp.ne.s32.totalorder %s24, %s27
      %p36 = scmp.eq.s32.totalorder %s19, 1
      %p37 = por %p35, %p36
      %p38 = scmp.ne.s32.totalorder %s27, %s28
      %p39 = scmp.eq.s32.totalorder %s19, 0
      %p40 = por %p38, %p39
      %p41 = scmp.ne.s32.totalorder %s27, %s28
      %p42 = scmp.eq.s32.totalorder %s20, 1
      %p43 = por %p41, %p42
      %p45 = scmp.ne.s32.totalorder %s28, %s44
      %p46 = scmp.eq.s32.totalorder %s20, 0
      %p47 = por %p45, %p46
      %s49 = sadd.s32 %s48, 1
      %p52 = scmp.eq.s32.totalorder %s14, 1
      %p53 = scmp.ne.s32.totalorder %s48, %s50
      %p54 = scmp.eq.s32.totalorder %s14, 0
      %p55 = por %p53, %p54
      %p56 = scmp.ne.s32.totalorder %s48, %s50
      %p57 = scmp.eq.s32.totalorder %s19, 1
      %p58 = por %p56, %p57
      %p59 = scmp.ne.s32.totalorder %s50, %s51
      %p60 = scmp.eq.s32.totalorder %s19, 0
      %p61 = por %p59, %p60
      %p62 = scmp.ne.s32.totalorder %s50, %s51
      %p63 = scmp.eq.s32.totalorder %s20, 1
      %p64 = por %p62, %p63
      %p66 = scmp.ne.s32.totalorder %s51, %s65
      %p67 = scmp.eq.s32.totalorder %s20, 0
      %p68 = por %p66, %p67
      %s70 = sadd.s32 %s69, 1
      %p73 = scmp.eq.s32.totalorder %s14, 1
      %p74 = scmp.ne.s32.totalorder %s69, %s71
      %p75 = scmp.eq.s32.totalorder %s14, 0
      %p76 = por %p74, %p75
      %p77 = scmp.ne.s32.totalorder %s69, %s71
      %p78 = scmp.eq.s32.totalorder %s19, 1
      %p79 = por %p77, %p78
      %p80 = scmp.ne.s32.totalorder %s71, %s72
      %p81 = scmp.eq.s32.totalorder %s19, 0
      %p82 = por %p80, %p81
      %p83 = scmp.ne.s32.totalorder %s71, %s72
      %p84 = scmp.eq.s32.totalorder %s20, 1
      %p85 = por %p83, %p84
      %p87 = scmp.ne.s32.totalorder %s72, %s86
      %p88 = scmp.eq.s32.totalorder %s20, 0
      %p89 = por %p87, %p88
      %s91 = sadd.s32 %s90, 1
      %p94 = scmp.eq.s32.totalorder %s14, 1
      %p95 = scmp.ne.s32.totalorder %s90, %s92
      %p96 = scmp.eq.s32.totalorder %s14, 0
      %p97 = por %p95, %p96
      %p98 = scmp.ne.s32.totalorder %s90, %s92
      %p99 = scmp.eq.s32.totalorder %s19, 1
      %p100 = por %p98, %p99
      %p101 = scmp.ne.s32.totalorder %s92, %s93
      %p102 = scmp.eq.s32.totalorder %s19, 0
      %p103 = por %p101, %p102
      %p104 = scmp.ne.s32.totalorder %s92, %s93
      %p105 = scmp.eq.s32.totalorder %s20, 1
      %p106 = por %p104, %p105
      %p108 = scmp.ne.s32.totalorder %s93, %s107
      %p109 = scmp.eq.s32.totalorder %s20, 0
      %p110 = por %p108, %p109
      %s112 = sadd.s32 %s111, 1
      %p115 = scmp.eq.s32.totalorder %s14, 1
      %p116 = scmp.ne.s32.totalorder %s111, %s113
      %p117 = scmp.eq.s32.totalorder %s14, 0
      %p118 = por %p116, %p117
      %p119 = scmp.ne.s32.totalorder %s111, %s113
      %p120 = scmp.eq.s32.totalorder %s19, 1
      %p121 = por %p119, %p120
      %p122 = scmp.ne.s32.totalorder %s113, %s114
      %p123 = scmp.eq.s32.totalorder %s19, 0
      %p124 = por %p122, %p123
      %p125 = scmp.ne.s32.totalorder %s113, %s114
      %p126 = scmp.eq.s32.totalorder %s20, 1
      %p127 = por %p125, %p126
      %p129 = scmp.ne.s32.totalorder %s114, %s128
      %p130 = scmp.eq.s32.totalorder %s20, 0
      %p131 = por %p129, %p130
      %s132 = ssub.s32 %s14, %s21
      %p133 = scmp.eq.s32.totalorder %s132, 0
      %s135 = sadd.s32 %s134, 1
      %s136 = scalar_select %p133, %s134, %s135
      %p139 = pneg %p133
      %p140 = scmp.eq.s32.totalorder %s14, 1
      %p141 = por %p139, %p140
      %p142 = scmp.ne.s32.totalorder %s134, %s137
      %p143 = scmp.eq.s32.totalorder %s14, 0
      %p144 = por %p142, %p143
      %p145 = scmp.ne.s32.totalorder %s134, %s137
      %p146 = scmp.eq.s32.totalorder %s19, 1
      %p147 = por %p145, %p146
      %p148 = scmp.ne.s32.totalorder %s137, %s138
      %p149 = scmp.eq.s32.totalorder %s19, 0
      %p150 = por %p148, %p149
      %p151 = scmp.ne.s32.totalorder %s137, %s138
      %p152 = scmp.eq.s32.totalorder %s20, 1
      %p153 = por %p151, %p152
      %p155 = scmp.ne.s32.totalorder %s138, %s154
      %p156 = scmp.eq.s32.totalorder %s20, 0
      %p157 = por %p155, %p156
      %p158 = scmp.le.s32.totalorder 1, %s14
      %p159 = scmp.lt.s32.totalorder %s14, 3
      %p160 = pnand %p158, %p159
      %p161 = pneg %p160
      // Predicated region
      $region9: #{tpu_custom_call.1} parent=5 // pred_check
        _
      $region10: #{tpu_custom_call.1} parent=5 // pred_check_branch
        %163 = sbr.rel (%p160) target = $region12
      $region11: #{tpu_custom_call.1} parent=5 // pred_region
        %s164 = ssub.s32 %s14, 1
        // Predicated region
        $region13: #{tpu_custom_call.1} parent=11 // pred_check
          %p165 = pneg %p61
        $region14: #{tpu_custom_call.1} parent=11 // pred_check_branch
          %167 = sbr.rel (%p165) target = $region16
        $region15: #{tpu_custom_call.1} parent=11 // pred_region
          _
        $region16: #{tpu_custom_call.1} parent=11 // pred_fallthru
          _
        // Predicated region
        $region17: #{tpu_custom_call.1} parent=11 // pred_check
          %p168 = pneg %p82
        $region18: #{tpu_custom_call.1} parent=11 // pred_check_branch
          %170 = sbr.rel (%p168) target = $region20
        $region19: #{tpu_custom_call.1} parent=11 // pred_region
          _
        $region20: #{tpu_custom_call.1} parent=11 // pred_fallthru
          _
        // Predicated region
        $region21: #{tpu_custom_call.1} parent=11 // pred_check
          %p171 = pneg %p103
        $region22: #{tpu_custom_call.1} parent=11 // pred_check_branch
          %173 = sbr.rel (%p171) target = $region24
        $region23: #{tpu_custom_call.1} parent=11 // pred_region
          _
        $region24: #{tpu_custom_call.1} parent=11 // pred_fallthru
          _
        // Predicated region
        $region25: #{tpu_custom_call.1} parent=11 // pred_check
          %p174 = pneg %p124
        $region26: #{tpu_custom_call.1} parent=11 // pred_check_branch
          %176 = sbr.rel (%p174) target = $region28
        $region27: #{tpu_custom_call.1} parent=11 // pred_region
          _
        $region28: #{tpu_custom_call.1} parent=11 // pred_fallthru
          _
      $region12: #{tpu_custom_call.1} parent=5 // pred_fallthru
        _
      %p177 = scmp.lt.s32.totalorder %s14, 2
      // Predicated region
      $region29: #{tpu_custom_call.1} parent=5 // pred_check
        %p178 = pneg %p177
      $region30: #{tpu_custom_call.1} parent=5 // pred_check_branch
        %180 = sbr.rel (%p178) target = $region32
      $region31: #{tpu_custom_call.1} parent=5 // pred_region
        // Predicated region
        $region33: #{tpu_custom_call.1} parent=31 // pred_check
          %p181 = pneg %p34
        $region34: #{tpu_custom_call.1} parent=31 // pred_check_branch
          %183 = sbr.rel (%p181) target = $region36
        $region35: #{tpu_custom_call.1} parent=31 // pred_region
          %p184 = scmp.lt.s32.totalorder %s14, 1
          %s185 = scalar_select %p184, %s14, 1
          %s186 = smul.addr %s185, 8
          %s187 = scalar_lea.vmem %s0, %s186
        $region36: #{tpu_custom_call.1} parent=31 // pred_fallthru
          _
      $region32: #{tpu_custom_call.1} parent=5 // pred_fallthru
        _
      %p188 = scmp.le.s32.totalorder 1, %s14
      %p189 = scmp.lt.s32.totalorder %s14, 3
      %p190 = pnand %p188, %p189
      %p191 = pneg %p190
      // Predicated region
      $region37: #{tpu_custom_call.1} parent=5 // pred_check
        _
      $region38: #{tpu_custom_call.1} parent=5 // pred_check_branch
        %193 = sbr.rel (%p190) target = $region40
      $region39: #{tpu_custom_call.1} parent=5 // pred_region
        %s194 = ssub.s32 %s14, 1
        %p195 = scmp.lt.s32.totalorder %s19, 1
        %s196 = scalar_select %p195, %s19, 1
        %s197 = smul.addr %s196, 8
        %s198 = scalar_lea.vmem %s0, %s197
        %p199 = pneg %p40
        %p200 = pneg %p37
        %p201 = pneg %p61
        %p202 = pneg %p58
        %p203 = pneg %p82
        %p204 = pneg %p79
        %p205 = pneg %p103
        %p206 = pneg %p100
        %p207 = pneg %p124
        %p208 = pneg %p121
        %p209 = pneg %p150
        %p210 = pneg %p147
        %s211 = sand.u32 %s137, 1
        %s212 = scalar_lea.sflag [#allocation3], %s211
        %s213 = sand.u32 %s137, 1
        %s214 = smul.addr %s213, 8
        %s215 = scalar_lea.vmem [#allocation2], %s214
        %p216 = scmp.lt.s32.totalorder %s19, 1
        %s217 = scalar_select %p216, %s19, 1
        %s218 = smul.addr %s217, 8
        %s219 = scalar_lea.vmem %s0, %s218
        %v220 = vld [vmem:[%s1] sm:$0xff]
        %v221 = vld [vmem:[%s1 + $0x8] sm:$0xff]
        %v222 = vld [vmem:[%s1 + $0x10] sm:$0xff]
        %v223 = vld [vmem:[%s1 + $0x18] sm:$0xff]
        %v224 = vld [vmem:[%s3] sm:$0xff]
        %v225 = vld [vmem:[%s3 + $0x8] sm:$0xff]
        %v226 = vld [vmem:[%s3 + $0x10] sm:$0xff]
        %v227 = vld [vmem:[%s3 + $0x18] sm:$0xff]
        %v228 = vld [vmem:[%s3 + $0x20] sm:$0xff]
        %v229 = vld [vmem:[%s3 + $0x28] sm:$0xff]
        %v230 = vld [vmem:[%s3 + $0x30] sm:$0xff]
        %v231 = vld [vmem:[%s3 + $0x38] sm:$0xff]
        %v232 = vld [vmem:[%s3 + $0x40] sm:$0xff]
        %v233 = vld [vmem:[%s3 + $0x48] sm:$0xff]
        %v234 = vld [vmem:[%s3 + $0x50] sm:$0xff]
        %v235 = vld [vmem:[%s3 + $0x58] sm:$0xff]
        %v236 = vld [vmem:[%s3 + $0x60] sm:$0xff]
        %v237 = vld [vmem:[%s3 + $0x68] sm:$0xff]
        %v238 = vld [vmem:[%s3 + $0x70] sm:$0xff]
        %v239 = vld [vmem:[%s3 + $0x78] sm:$0xff]
        %v240 = vld [vmem:[%s219] sm:$0xff]
        %v241 = vld [vmem:[%s2] sm:$0x1]
        %v243 = vlaneseq
        %v244 = vshrl.u32 %v243, 7
        %v245 = vsub.s32 0, %v244
        %v246 = vrot.slane %v241, %v245
        %vm248 = vcmask 261120
        %v250 = vsel %vm248, %v240, 0
        %252 = vmatprep.subr.mxu0 0.0
        %253 = vmatpush1.msra.mxu0 0.0
        %254 = vmatprep.subr.mxu0 0.0
        %255 = vmatpush1.msra.mxu0 0.0
        %256 = vmatprep.subr.mxu0 0.0
        %257 = vmatpush1.msra.mxu0 0.0
        %258 = vmatprep.subr.mxu0 0.0
        %259 = vmatpush1.msra.mxu0 0.0
        %260 = vmatprep.subr.mxu0 0.0
        %261 = vmatpush1.msra.mxu0 0.0
        %262 = vmatprep.subr.mxu0 0.0
        %263 = vmatpush1.msra.mxu0 0.0
        %264 = vmatprep.subr.mxu0 0.0
        %265 = vmatpush1.msra.mxu0 0.0
        %266 = vmatprep.subr.mxu0 0.0
        %267 = vmatpush1.msra.mxu0 0.0
        %268 = vmatprep.subr.mxu0 0.0
        %269 = vmatpush1.msra.mxu0 0.0
        %270 = vmatprep.subr.mxu0 0.0
        %271 = vmatpush1.msra.mxu0 0.0
        %272 = vmatprep.subr.mxu0 0.0
        %273 = vmatpush1.msra.mxu0 0.0
        %274 = vmatprep.subr.mxu0 0.0
        %275 = vmatpush1.msra.mxu0 0.0
        %276 = vmatprep.subr.mxu0 0.0
        %277 = vmatpush1.msra.mxu0 %v223
        %278 = vmatprep.subr.mxu0 0.0
        %279 = vmatpush1.msra.mxu0 %v222
        %280 = vmatprep.subr.mxu0 0.0
        %281 = vmatpush1.msra.mxu0 %v221
        %282 = vmatprep.subr.mxu0 0.0
        %283 = vmatpush1.msra.mxu0 %v220
        %284 = vmatprep.subr.mxu0 0.0
        %285 = vmatpush2.msra.mxu0 0.0
        %286 = vmatprep.subr.mxu0 0.0
        %287 = vmatpush2.msra.mxu0 0.0
        %288 = vmatprep.subr.mxu0 0.0
        %289 = vmatpush2.msra.mxu0 0.0
        %290 = vmatprep.subr.mxu0 0.0
        %291 = vmatpush2.msra.mxu0 0.0
        %292 = vmatprep.subr.mxu0 0.0
        %293 = vmatpush2.msra.mxu0 0.0
        %294 = vmatprep.subr.mxu0 0.0
        %295 = vmatpush2.msra.mxu0 0.0
        %296 = vmatprep.subr.mxu0 0.0
        %297 = vmatpush2.msra.mxu0 0.0
        %298 = vmatprep.subr.mxu0 0.0
        %299 = vmatpush2.msra.mxu0 0.0
        %300 = vmatprep.subr.mxu0 0.0
        %301 = vmatpush2.msra.mxu0 0.0
        %302 = vmatprep.subr.mxu0 0.0
        %303 = vmatpush2.msra.mxu0 0.0
        %304 = vmatprep.subr.mxu0 0.0
        %305 = vmatpush2.msra.mxu0 0.0
        %306 = vmatprep.subr.mxu0 0.0
        %307 = vmatpush2.msra.mxu0 0.0
        %308 = vmatprep.subr.mxu0 0.0
        %309 = vmatpush2.msra.mxu0 0.0
        %310 = vmatprep.subr.mxu0 0.0
        %311 = vmatpush2.msra.mxu0 0.0
        %312 = vmatprep.subr.mxu0 0.0
        %313 = vmatpush2.msra.mxu0 0.0
        %314 = vmatprep.subr.mxu0 0.0
        %315 = vmatpush2.msra.mxu0 0.0
        %316 = vmatprep.mubr.f32.mxu0 0.0
        %317 = vmatmul.mubr.f32.gmra.mxu0 %v250
        %v318 = vpop.f32.mrf.mxu0
        %v319 = vadd.f32 %v246, %v318
        %v320 = vpop.f32.mrf.mxu0
        %321 = vdwg.mxu0
        %v322 = vmul.f32 %v319, %v319
        %v323 = vmul.f32 %v322, 0.035677407
        %v324 = vadd.f32 %v323, 0.7978846
        %v325 = vmul.f32 %v319, %v324
        %v326 = vmul.f32 %v319, 0.5
        %v327 = vtanh.pop %v325
        %v328 = vadd.f32 %v327, 1.0
        %v329 = vmul.f32 %v326, %v328
        %v330 = vld [vmem:[%s4] sm:$0x1]
        %v332 = vlaneseq
        %v333 = vshrl.u32 %v332, 7
        %v334 = vsub.s32 0, %v333
        %v335 = vrot.slane %v330, %v334
        %337 = vmatprep.subr.mxu0 0.0
        %338 = vmatpush1.msra.mxu0 %v239
        %339 = vmatprep.subr.mxu0 0.0
        %340 = vmatpush1.msra.mxu0 %v238
        %341 = vmatprep.subr.mxu0 0.0
        %342 = vmatpush1.msra.mxu0 %v237
        %343 = vmatprep.subr.mxu0 0.0
        %344 = vmatpush1.msra.mxu0 %v236
        %345 = vmatprep.subr.mxu0 0.0
        %346 = vmatpush1.msra.mxu0 %v235
        %347 = vmatprep.subr.mxu0 0.0
        %348 = vmatpush1.msra.mxu0 %v234
        %349 = vmatprep.subr.mxu0 0.0
        %350 = vmatpush1.msra.mxu0 %v233
        %351 = vmatprep.subr.mxu0 0.0
        %352 = vmatpush1.msra.mxu0 %v232
        %353 = vmatprep.subr.mxu0 0.0
        %354 = vmatpush1.msra.mxu0 %v231
        %355 = vmatprep.subr.mxu0 0.0
        %356 = vmatpush1.msra.mxu0 %v230
        %357 = vmatprep.subr.mxu0 0.0
        %358 = vmatpush1.msra.mxu0 %v229
        %359 = vmatprep.subr.mxu0 0.0
        %360 = vmatpush1.msra.mxu0 %v228
        %361 = vmatprep.subr.mxu0 0.0
        %362 = vmatpush1.msra.mxu0 %v227
        %363 = vmatprep.subr.mxu0 0.0
        %364 = vmatpush1.msra.mxu0 %v226
        %365 = vmatprep.subr.mxu0 0.0
        %366 = vmatpush1.msra.mxu0 %v225
        %367 = vmatprep.subr.mxu0 0.0
        %368 = vmatpush1.msra.mxu0 %v224
        %369 = vmatprep.subr.mxu0 0.0
        %370 = vmatpush2.msra.mxu0 0.0
        %371 = vmatprep.subr.mxu0 0.0
        %372 = vmatpush2.msra.mxu0 0.0
        %373 = vmatprep.subr.mxu0 0.0
        %374 = vmatpush2.msra.mxu0 0.0
        %375 = vmatprep.subr.mxu0 0.0
        %376 = vmatpush2.msra.mxu0 0.0
        %377 = vmatprep.subr.mxu0 0.0
        %378 = vmatpush2.msra.mxu0 0.0
        %379 = vmatprep.subr.mxu0 0.0
        %380 = vmatpush2.msra.mxu0 0.0
        %381 = vmatprep.subr.mxu0 0.0
        %382 = vmatpush2.msra.mxu0 0.0
        %383 = vmatprep.subr.mxu0 0.0
        %384 = vmatpush2.msra.mxu0 0.0
        %385 = vmatprep.subr.mxu0 0.0
        %386 = vmatpush2.msra.mxu0 0.0
        %387 = vmatprep.subr.mxu0 0.0
        %388 = vmatpush2.msra.mxu0 0.0
        %389 = vmatprep.subr.mxu0 0.0
        %390 = vmatpush2.msra.mxu0 0.0
        %391 = vmatprep.subr.mxu0 0.0
        %392 = vmatpush2.msra.mxu0 0.0
        %393 = vmatprep.subr.mxu0 0.0
        %394 = vmatpush2.msra.mxu0 0.0
        %395 = vmatprep.subr.mxu0 0.0
        %396 = vmatpush2.msra.mxu0 0.0
        %397 = vmatprep.subr.mxu0 0.0
        %398 = vmatpush2.msra.mxu0 0.0
        %399 = vmatprep.subr.mxu0 0.0
        %400 = vmatpush2.msra.mxu0 0.0
        %401 = vmatprep.mubr.f32.mxu0 0.0
        %402 = vmatmul.mubr.f32.gmra.mxu0 %v329
        %v403 = vpop.f32.mrf.mxu0
        %v404 = vadd.f32 %v335, %v403
        %v405 = vpop.f32.mrf.mxu0
        %406 = vdwg.mxu0
        %407 = vst.msk [vmem:[%s215] sm:$0xff] %vm248, %v404
        %s408 = sand.u32 %s137, 1
        %s409 = scalar_lea.sflag [#allocation3], %s408
        %s410 = sand.u32 %s137, 1
        %s411 = smul.addr %s410, 8
        %s412 = scalar_lea.vmem [#allocation2], %s411
        // Predicated region
        $region41: #{tpu_custom_call.1} parent=39 // pred_check
          %p413 = pneg %p147
        $region42: #{tpu_custom_call.1} parent=39 // pred_check_branch
          %415 = sbr.rel (%p413) target = $region44
        $region43: #{tpu_custom_call.1} parent=39 // pred_region
          %s417 = ssub.s32 128, 128
          %418 = vsyncadd %s409, %s417
          %s419 = smul.addr %s19, 128
          %s420 = scalar_lea.hbm %s5, %s419
          %s422 = sshll.u32 %s412, 4
          %s423 = int_to_ptr.vmem [resolvable:$true] %s422
          %425 = dma.vmem_to_hbm [thread:$0]  %s423, 128, %s420, %s409
        $region44: #{tpu_custom_call.1} parent=39 // pred_fallthru
          _
      $region40: #{tpu_custom_call.1} parent=5 // pred_fallthru
        _
      %p426 = scmp.le.s32.totalorder 2, %s14
      // Predicated region
      $region45: #{tpu_custom_call.1} parent=5 // pred_check
        %p427 = pneg %p426
      $region46: #{tpu_custom_call.1} parent=5 // pred_check_branch
        %429 = sbr.rel (%p427) target = $region48
      $region47: #{tpu_custom_call.1} parent=5 // pred_region
        %s430 = ssub.s32 %s14, 2
        // Predicated region
        $region49: #{tpu_custom_call.1} parent=47 // pred_check
          %p431 = pneg %p153
        $region50: #{tpu_custom_call.1} parent=47 // pred_check_branch
          %433 = sbr.rel (%p431) target = $region52
        $region51: #{tpu_custom_call.1} parent=47 // pred_region
          %s434 = sand.u32 %s138, 1
          %s435 = scalar_lea.sflag [#allocation3], %s434
          %s436 = sand.u32 %s138, 1
          %s437 = smul.addr %s436, 8
          %s438 = scalar_lea.vmem [#allocation2], %s437
          %439 = dma.done %s435, 128
        $region52: #{tpu_custom_call.1} parent=47 // pred_fallthru
          _
      $region48: #{tpu_custom_call.1} parent=5 // pred_fallthru
        _
    $region6: #{tpu_custom_call.1} parent=1 // loop_footer
      %s18 = sadd.s32 1, %s14
    $region7: #{tpu_custom_call.1} parent=1 // loop_footer_branch
      %13 = sbr.rel target = $region3
    $region8: #{tpu_custom_call.1} parent=1 // loop_exit
      _
    %440 = vsyncpa [#allocation3], 1
    %s441 = scalar_lea.sflag [#allocation3], 1
    %442 = vsyncpa %s441, 1

</llo_original>
